<compile_context>
chip_gen: v7x
topology: tpu7x:2x2x1
jax: 0.10.0
libtpu: 0.0.40
codegen_flags: <defaults>
</compile_context>

<pallas_src>
import functools

import jax
import jax.numpy as jnp
from jax.experimental import pallas as pl
from jax.experimental.pallas import tpu as pltpu

ROW_TILE = 2048          # rows per grid step for fused MLP kernels (adapts down for small N)
NODE_TILE = 512          # scatter-add: node tile (one-hot rows / output tile)
EDGE_TILE = 1024         # scatter-add: edge tile (one-hot cols / contraction)
ACT_DTYPE = jnp.bfloat16  # HBM storage dtype for intermediate activations
VMEM_LIMIT = 48 * 1024 * 1024  # explicit scoped-VMEM limit (v5e default 16 MiB; < v7x 64 MiB)


def _round_up(n, m):
    return ((n + m - 1) // m) * m


# ----------------------------------------------------------------------------
# Pallas kernels
# ----------------------------------------------------------------------------
def _fused_mlp_kernel(*refs, n_inputs, layer_cfgs, residual_input, l2norm):
    """Whole MLP stack (+ optional residual add + optional L2 normalize) on one
    [row_tile, *] slab.  Feature-concat of the inputs is folded into the first
    matmul; all weights stay VMEM-resident; intermediates never touch HBM.

    refs = (in_0 .. in_{k-1},
            W0_0 .. W0_{k-1}, b0, g0, bt0,        # first layer, weight split per input
            W1, b1, g1, bt1, ..., out_ref)
    """
    ins = refs[:n_inputs]
    out_ref = refs[-1]
    params = refs[n_inputs:-1]

    def ln_act(h, gamma, beta, use_ln, act):
        if use_ln:
            mean = jnp.mean(h, axis=-1, keepdims=True)
            cent = h - mean
            var = jnp.mean(cent * cent, axis=-1, keepdims=True)
            h = cent * jax.lax.rsqrt(var + 1e-5)      # torch LayerNorm eps, f32 stats
            h = h * gamma + beta
        if act == "relu":
            h = jnp.maximum(h, 0.0)
        elif act == "tanh":
            h = jnp.tanh(h)
        return h

    pi = 0
    # Layer 0: concat([inputs]) @ W0 == sum_i inputs[i] @ W0_i (concat fused away).
    h = jnp.dot(ins[0][...].astype(jnp.float32), params[pi][...],
                preferred_element_type=jnp.float32)
    pi += 1
    for i in range(1, n_inputs):
        h = h + jnp.dot(ins[i][...].astype(jnp.float32), params[pi][...],
                        preferred_element_type=jnp.float32)
        pi += 1
    h = h + params[pi][...]
    use_ln0, act0 = layer_cfgs[0]
    h = ln_act(h, params[pi + 1][...], params[pi + 2][...], use_ln0, act0)
    pi += 3

    # Remaining layers: weights resident in VMEM, activations stay on-chip.
    for li in range(1, len(layer_cfgs)):
        w = params[pi][...]
        b = params[pi + 1][...]
        gamma = params[pi + 2][...]
        beta = params[pi + 3][...]
        pi += 4
        h = jnp.dot(h, w, preferred_element_type=jnp.float32) + b
        use_ln, act = layer_cfgs[li]
        h = ln_act(h, gamma, beta, use_ln, act)

    if residual_input is not None:                 # fused residual add
        h = h + ins[residual_input][...].astype(jnp.float32)
    if l2norm:                                     # fused F.normalize(p=2, dim=1)
        sumsq = jnp.sum(h * h, axis=-1, keepdims=True)
        # x * rsqrt(max(sumsq, eps^2)) == x / max(||x||, eps)  (eps = 1e-12)
        h = h * jax.lax.rsqrt(jnp.maximum(sumsq, 1e-24))
    out_ref[...] = h.astype(out_ref.dtype)


def _scatter_add_kernel(nb_ref, eb_ref, flags_ref, idx_ref, vals_ref, o_ref, acc_ref):
    """One schedule step of the sorted-segment scatter-add.

    Prefetched (SMEM) per-step schedule:
      nb_ref[t]    : node-tile index this step contributes to (output block)
      eb_ref[t]    : edge-block index to load (input blocks)
      flags_ref[t] : bit0 = first step of this node tile (zero accumulator)
                     bit1 = last step of this node tile (write accumulator out)
                     bit2 = step carries a real edge block (do the accumulate)
    """
    t = pl.program_id(0)
    flags = flags_ref[t]

    @pl.when((flags & 1) != 0)
    def _init():
        acc_ref[...] = jnp.zeros_like(acc_ref)

    @pl.when((flags & 4) != 0)
    def _accumulate():
        nt = acc_ref.shape[0]
        et = vals_ref.shape[0]
        node_ids = (jax.lax.broadcasted_iota(jnp.int32, (nt, et), 0)
                    + nb_ref[t] * nt)
        # (Nt, Et) one-hot, bf16 (0/1 exact), clean (Nt,K)x(K,D) MXU feed, f32 acc.
        onehot = (idx_ref[...] == node_ids).astype(jnp.bfloat16)
        acc_ref[...] += jnp.dot(onehot, vals_ref[...].astype(jnp.bfloat16),
                                preferred_element_type=jnp.float32)

    @pl.when((flags & 2) != 0)
    def _writeback():
        o_ref[...] = acc_ref[...].astype(o_ref.dtype)


# ----------------------------------------------------------------------------
# Pallas wrappers
# ----------------------------------------------------------------------------
def fused_mlp(layers, inputs, *, residual_input=None, l2norm=False,
              out_dtype=None, row_tile=ROW_TILE):
    """Run a whole MLP (+ optional residual add, + optional row L2-normalize)
    in a single pallas_call.  `inputs` is a list of [N, d_i] arrays that are
    logically concatenated along the feature axis (fused into the first matmul)."""
    if out_dtype is None:
        out_dtype = ACT_DTYPE
    inputs = [jnp.asarray(a) for a in inputs]
    n = int(inputs[0].shape[0])
    rt = min(row_tile, _round_up(n, 8))
    n_pad = _round_up(n, rt)
    if n_pad != n:
        inputs = [jnp.pad(a, ((0, n_pad - n), (0, 0))) for a in inputs]

    in_dims = [int(a.shape[1]) for a in inputs]
    d_out = int(layers[-1]["w"].shape[1])

    param_arrays, param_specs = [], []

    def add_param(a):
        a = jnp.asarray(a, jnp.float32)
        param_arrays.append(a)
        # TODO(synk): pipeline_mode=pl.Buffered(1) (or a one-time VMEM scratch copy) would
        # avoid double-buffering these constant-index weight blocks; only matters if hidden grows.
        param_specs.append(pl.BlockSpec(a.shape, lambda i: (0, 0)))

    # First-layer weight split row-wise per input (so the concat is never built).
    w0 = layers[0]["w"]
    off = 0
    for d in in_dims:
        add_param(w0[off:off + d, :])
        off += d
    add_param(layers[0]["b"].reshape(1, -1))
    add_param(layers[0]["gamma"].reshape(1, -1))
    add_param(layers[0]["beta"].reshape(1, -1))
    for lyr in layers[1:]:
        add_param(lyr["w"])
        add_param(lyr["b"].reshape(1, -1))
        add_param(lyr["gamma"].reshape(1, -1))
        add_param(lyr["beta"].reshape(1, -1))

    layer_cfgs = tuple((lyr["use_ln"], lyr["act"]) for lyr in layers)

    kernel = functools.partial(
        _fused_mlp_kernel,
        n_inputs=len(inputs),
        layer_cfgs=layer_cfgs,
        residual_input=residual_input,
        l2norm=l2norm,
    )
    out = pl.pallas_call(
        kernel,
        out_shape=jax.ShapeDtypeStruct((n_pad, d_out), out_dtype),
        grid=(n_pad // rt,),
        in_specs=[pl.BlockSpec((rt, d), lambda i: (i, 0)) for d in in_dims]
                 + param_specs,
        out_specs=pl.BlockSpec((rt, d_out), lambda i: (i, 0)),
        compiler_params=pltpu.CompilerParams(
            dimension_semantics=("parallel",),
            vmem_limit_bytes=VMEM_LIMIT),
    )(*inputs, *param_arrays)
    return out[:n]


def _build_scatter_schedule(idx_sorted_padded, n_pad, nt, et):
    """Flat schedule for the sorted-segment scatter.  Each node tile owns a
    contiguous run of steps, one per edge block overlapping its edge range
    (at least one step so every output tile is written).  Static length
    T = e_blocks + n_tiles upper-bounds the true schedule length."""
    n_tiles = n_pad // nt
    e_pad = int(idx_sorted_padded.shape[0])
    e_blocks = e_pad // et
    T = e_blocks + n_tiles

    boundaries = jnp.arange(n_tiles + 1, dtype=jnp.int32) * nt
    starts = jnp.searchsorted(idx_sorted_padded, boundaries, side="left").astype(jnp.int32)
    s, e = starts[:-1], starts[1:]
    has = e > s
    b_start = jnp.where(has, s // et, 0)
    b_last = jnp.where(has, jnp.maximum(e - 1, 0) // et, 0)
    count = jnp.where(has, b_last - b_start + 1, 0)
    m = jnp.maximum(count, 1)                  # steps per node tile (>= 1)
    cum = jnp.cumsum(m)                        # inclusive
    start_step = cum - m

    t = jnp.arange(T, dtype=jnp.int32)
    nb = jnp.searchsorted(cum, t, side="right").astype(jnp.int32)
    total = cum[-1]
    valid = t < total
    nb = jnp.minimum(nb, n_tiles - 1)
    l = t - start_step[nb]
    eb = jnp.clip(b_start[nb] + l, 0, e_blocks - 1).astype(jnp.int32)
    accum = valid & (l < count[nb])
    first = valid & (l == 0)
    last = valid & (l == m[nb] - 1)
    flags = (first.astype(jnp.int32)
             + 2 * last.astype(jnp.int32)
             + 4 * accum.astype(jnp.int32))
    return nb, eb, flags


def make_scatter_plan(dst_sorted, num_nodes, *, node_tile=NODE_TILE, edge_tile=EDGE_TILE):
    """Build (once per graph) the scalar-prefetch schedule for scatter_add."""
    E = int(dst_sorted.shape[0])
    nt = min(node_tile, _round_up(num_nodes, 8))
    et = min(edge_tile, _round_up(E, 8))
    n_pad = _round_up(num_nodes, nt)
    e_pad = _round_up(E, et)
    # Pads carry dst == n_pad: sorts to the end, never matches any node id.
    idx_p = jnp.pad(dst_sorted.astype(jnp.int32), (0, e_pad - E),
                    constant_values=n_pad)
    nb, eb, flags = _build_scatter_schedule(idx_p, n_pad, nt, et)
    return dict(num_nodes=num_nodes, nt=nt, et=et, n_pad=n_pad, e_pad=e_pad,
                T=int(nb.shape[0]), idx2d=idx_p.reshape(1, e_pad),
                nb=nb, eb=eb, flags=flags)


def scatter_add(plan, vals):
    """out[n, :] = sum_{e : dst_sorted[e] == n} vals[e, :]  (torch scatter_add, dim 0).

    Requires `vals` in dst-sorted edge order (see make_scatter_plan)."""
    E, D = int(vals.shape[0]), int(vals.shape[1])
    nt, et, e_pad = plan["nt"], plan["et"], plan["e_pad"]
    vals_p = vals.astype(ACT_DTYPE)
    if e_pad != E:
        vals_p = jnp.pad(vals_p, ((0, e_pad - E), (0, 0)))

    # TODO(synk): fusing the node-network MLP into the last-step writeback would avoid
    # rewriting/rereading the [N, latent] messages array each cell.
    # TODO(synk): splitting the schedule into two independent node-tile halves would give v7x's
    # second TensorCore a 'parallel' axis to shard; single 'arbitrary' axis kept for simplicity.
    grid_spec = pltpu.PrefetchScalarGridSpec(
        num_scalar_prefetch=3,
        grid=(plan["T"],),
        in_specs=[
            pl.BlockSpec((1, et), lambda t, nb, eb, fl: (0, eb[t])),
            pl.BlockSpec((et, D), lambda t, nb, eb, fl: (eb[t], 0)),
        ],
        out_specs=pl.BlockSpec((nt, D), lambda t, nb, eb, fl: (nb[t], 0)),
        scratch_shapes=[pltpu.VMEM((nt, D), jnp.float32)],
    )
    out = pl.pallas_call(
        _scatter_add_kernel,
        out_shape=jax.ShapeDtypeStruct((plan["n_pad"], D), ACT_DTYPE),
        grid_spec=grid_spec,
        compiler_params=pltpu.CompilerParams(
            dimension_semantics=("arbitrary",),
            vmem_limit_bytes=VMEM_LIMIT),
    )(plan["nb"], plan["eb"], plan["flags"], plan["idx2d"], vals_p)
    return out[:plan["num_nodes"]]


# ----------------------------------------------------------------------------
# Parameter construction (deterministic, synthetic; mirrors exatrkx make_mlp)
# ----------------------------------------------------------------------------
def init_mlp(key, d_in, d_hidden, d_out, n_layers, *, layer_norm,
             hidden_act, output_act):
    sizes = [d_in] + [d_hidden] * (n_layers - 1) + [d_out]
    layers = []
    for i in range(n_layers):
        key, kw = jax.random.split(key)
        w = (jax.random.normal(kw, (sizes[i], sizes[i + 1]), jnp.float32)
             / jnp.sqrt(jnp.float32(sizes[i])))
        b = jnp.zeros((sizes[i + 1],), jnp.float32)
        gamma = jnp.ones((sizes[i + 1],), jnp.float32)
        beta = jnp.zeros((sizes[i + 1],), jnp.float32)
        is_last = i == n_layers - 1
        act = output_act if is_last else hidden_act
        # exatrkx make_mlp: hidden layers always get LayerNorm when layer_norm=True;
        # final layer gets (LayerNorm, activation) only if output_activation is set.
        use_ln = layer_norm and (True if not is_last else output_act is not None)
        layers.append(dict(w=w, b=b, gamma=gamma, beta=beta,
                           use_ln=bool(use_ln), act=act))
    return layers


def init_interaction_gnn_block(key, hparams, iterations):
    k_ne, k_ee, k_out, k_cells = jax.random.split(key, 4)
    params = {
        "node_encoder": init_mlp(
            k_ne, hparams["spatial_channels"], hparams["hidden"],
            hparams["latent"], hparams["nb_node_layer"],
            layer_norm=hparams["layernorm"],
            hidden_act=hparams["hidden_activation"],
            output_act=hparams["hidden_activation"]),
        "edge_encoder": init_mlp(
            k_ee, 2 * hparams["spatial_channels"], hparams["hidden"],
            hparams["latent"], hparams["nb_edge_layer"],
            layer_norm=hparams["layernorm"],
            hidden_act=hparams["hidden_activation"],
            output_act=hparams["hidden_activation"]),
        "output_layer": init_mlp(
            k_out, hparams["latent"], hparams["hidden"], hparams["emb_dim"],
            hparams["output_layers"], layer_norm=hparams["layernorm"],
            hidden_act=hparams["hidden_output_activation"], output_act=None),
    }
    cells = []
    cell_keys = jax.random.split(k_cells, iterations)
    shared = None
    for it in range(iterations):
        if hparams["share_weight"] and shared is not None:
            cells.append(shared)
            continue
        kn, ke = jax.random.split(cell_keys[it])
        cell = {
            "node_network": init_mlp(
                kn, 2 * hparams["latent"], hparams["hidden"], hparams["latent"],
                hparams["nb_node_layer"], layer_norm=hparams["layernorm"],
                hidden_act=hparams["hidden_activation"],
                output_act=hparams["hidden_activation"]),
            "edge_network": init_mlp(
                ke, 3 * hparams["latent"], hparams["hidden"], hparams["latent"],
                hparams["nb_edge_layer"], layer_norm=hparams["layernorm"],
                hidden_act=hparams["hidden_activation"],
                output_act=hparams["hidden_activation"]),
        }
        if hparams["share_weight"]:
            shared = cell
        cells.append(cell)
    params["cells"] = cells
    return params


# ----------------------------------------------------------------------------
# Forward pass (matches InteractionGNNBlock.forward)
# ----------------------------------------------------------------------------
def interaction_gnn_block_forward(params, x, graph):
    src = graph[0]
    dst = graph[1]
    num_nodes = int(x.shape[0])
    x = jnp.asarray(x, jnp.float32)

    # Sort edges by destination ONCE (graph is static across GNN cells): every
    # per-edge tensor lives in dst-sorted order inside the loop, which lets the
    # scatter-add run as an O(E + N) sorted-segment reduction (scalar-prefetched
    # schedule) instead of an O(N x E) one-hot scan; unpermute edges at the end.
    order = jnp.argsort(dst)
    inv_order = jnp.argsort(order)
    src_s = src[order]
    dst_s = dst[order]

    # Encoders (torch.utils.checkpoint / requires_grad are forward-semantics no-ops).
    nodes = fused_mlp(params["node_encoder"], [x])
    edges = fused_mlp(params["edge_encoder"], [x[src_s], x[dst_s]])

    plan = make_scatter_plan(dst_s, num_nodes)

    # Interaction GNN cells (message aggregation + node/edge MLPs with residuals).
    for cell in params["cells"]:
        messages = scatter_add(plan, edges)
        nodes = fused_mlp(cell["node_network"], [nodes, messages],
                          residual_input=0)
        # TODO(synk): fuse the nodes[src]/nodes[dst] row-gathers into the edge-MLP kernel
        # (VMEM-resident nodes table + in-kernel gather); kept as XLA gathers (bf16 halves
        # the traffic) pending portable Mosaic row-gather lowering.
        edges = fused_mlp(cell["edge_network"],
                          [nodes[src_s], nodes[dst_s], edges],
                          residual_input=2)

    # Output MLP with F.normalize fused into the same kernel.
    embeddings = fused_mlp(params["output_layer"], [nodes], l2norm=True,
                           out_dtype=jnp.float32)
    nodes_out = nodes.astype(jnp.float32)
    edges_out = edges[inv_order].astype(jnp.float32)
    return embeddings, nodes_out, edges_out


# ----------------------------------------------------------------------------
# Pure-JAX f32 reference (for correctness check)
# ----------------------------------------------------------------------------
def _apply_mlp_ref(layers, h):
    for lyr in layers:
        h = jnp.dot(h, lyr["w"], precision=jax.lax.Precision.HIGHEST) + lyr["b"]
        if lyr["use_ln"]:
            mean = jnp.mean(h, axis=-1, keepdims=True)
            var = jnp.mean((h - mean) ** 2, axis=-1, keepdims=True)
            h = (h - mean) * jax.lax.rsqrt(var + 1e-5)
            h = h * lyr["gamma"] + lyr["beta"]
        if lyr["act"] == "relu":
            h = jnp.maximum(h, 0.0)
        elif lyr["act"] == "tanh":
            h = jnp.tanh(h)
    return h


def _forward_ref(params, x, graph):
    src, dst = graph[0], graph[1]
    n = x.shape[0]
    nodes = _apply_mlp_ref(params["node_encoder"], x)
    edges = _apply_mlp_ref(params["edge_encoder"],
                           jnp.concatenate([x[src], x[dst]], axis=1))
    for cell in params["cells"]:
        msg = jax.ops.segment_sum(edges, dst, num_segments=n)
        nodes = _apply_mlp_ref(cell["node_network"],
                               jnp.concatenate([nodes, msg], axis=1)) + nodes
        edges = _apply_mlp_ref(cell["edge_network"],
                               jnp.concatenate([nodes[src], nodes[dst], edges],
                                               axis=1)) + edges
    emb = _apply_mlp_ref(params["output_layer"], nodes)
    emb = emb / jnp.maximum(jnp.linalg.norm(emb, axis=1, keepdims=True), 1e-12)
    return emb, nodes, edges


def _assert_close(name, got, ref, atol=3e-2, rtol=3e-2):
    got = jnp.asarray(got, jnp.float32)
    ref = jnp.asarray(ref, jnp.float32)
    err = jnp.abs(got - ref)
    ok = bool(jnp.all(err <= atol + rtol * jnp.abs(ref)))
    assert ok, f"{name} mismatch vs reference: max abs err {float(jnp.max(err))}"


# ----------------------------------------------------------------------------
# Demo
# ----------------------------------------------------------------------------
if __name__ == "__main__":
    hparams = {
        "spatial_channels": 3,
        "hidden": 64,
        "latent": 32,
        "nb_node_layer": 2,
        "nb_edge_layer": 2,
        "emb_dim": 8,
        "output_layers": 2,
        "hidden_activation": "relu",
        "hidden_output_activation": "relu",
        "layernorm": True,
        "share_weight": False,
    }
    iterations = 2

    N_NODES, N_EDGES = 64, 128

    key = jax.random.PRNGKey(0)
    k_param, k_x, k_src, k_dst = jax.random.split(key, 4)

    params = init_interaction_gnn_block(k_param, hparams, iterations)
    x = jax.random.normal(k_x, (N_NODES, hparams["spatial_channels"]), jnp.float32)
    graph = jnp.stack([
        jax.random.randint(k_src, (N_EDGES,), 0, N_NODES, dtype=jnp.int32),
        jax.random.randint(k_dst, (N_EDGES,), 0, N_NODES, dtype=jnp.int32),
    ], axis=0)

    embeddings, nodes, edges = interaction_gnn_block_forward(params, x, graph)
    jax.block_until_ready((embeddings, nodes, edges))

    assert embeddings.shape == (N_NODES, hparams["emb_dim"])
    assert nodes.shape == (N_NODES, hparams["latent"])
    assert edges.shape == (N_EDGES, hparams["latent"])
    assert bool(jnp.all(jnp.isfinite(embeddings)))
    assert bool(jnp.all(jnp.isfinite(nodes)))
    assert bool(jnp.all(jnp.isfinite(edges)))

    # Compare against the f32 reference; tolerance accounts for the bf16 HBM
    # storage of intermediate activations (kernel math itself accumulates in f32).
    emb_ref, nodes_ref, edges_ref = _forward_ref(params, x, graph)
    _assert_close("embeddings", embeddings, emb_ref)
    _assert_close("nodes", nodes, nodes_ref)
    _assert_close("edges", edges, edges_ref)

    print("KERNEL_OK")
</pallas_src>

<mosaic_0001>
module attributes {stable_mosaic.version = 11 : i64} {
  func.func @_fused_mlp_kernel(%arg0: i32, %arg1: memref<64x3xf32, #tpu.memory_space<vmem>>, %arg2: memref<3x64xf32, #tpu.memory_space<vmem>>, %arg3: memref<1x64xf32, #tpu.memory_space<vmem>>, %arg4: memref<1x64xf32, #tpu.memory_space<vmem>>, %arg5: memref<1x64xf32, #tpu.memory_space<vmem>>, %arg6: memref<64x32xf32, #tpu.memory_space<vmem>>, %arg7: memref<1x32xf32, #tpu.memory_space<vmem>>, %arg8: memref<1x32xf32, #tpu.memory_space<vmem>>, %arg9: memref<1x32xf32, #tpu.memory_space<vmem>>, %arg10: memref<64x32xbf16, #tpu.memory_space<vmem>>) attributes {dimension_semantics = [#tpu.dimension_semantics<parallel>], iteration_bounds = array<i64: 1>, scalar_prefetch = 0 : i64, scratch_operands = 0 : i64, tpu.core_type = #tpu.core_type<tc>, window_params = [{transform_indices = @transform_0, window_bounds = array<i64: 64, 3>}, {pipeline_mode = #tpu.pipeline_mode<synchronous>, transform_indices = @transform_1, window_bounds = array<i64: 3, 64>}, {pipeline_mode = #tpu.pipeline_mode<synchronous>, transform_indices = @transform_2, window_bounds = array<i64: 1, 64>}, {pipeline_mode = #tpu.pipeline_mode<synchronous>, transform_indices = @transform_3, window_bounds = array<i64: 1, 64>}, {pipeline_mode = #tpu.pipeline_mode<synchronous>, transform_indices = @transform_4, window_bounds = array<i64: 1, 64>}, {pipeline_mode = #tpu.pipeline_mode<synchronous>, transform_indices = @transform_5, window_bounds = array<i64: 64, 32>}, {pipeline_mode = #tpu.pipeline_mode<synchronous>, transform_indices = @transform_6, window_bounds = array<i64: 1, 32>}, {pipeline_mode = #tpu.pipeline_mode<synchronous>, transform_indices = @transform_7, window_bounds = array<i64: 1, 32>}, {pipeline_mode = #tpu.pipeline_mode<synchronous>, transform_indices = @transform_8, window_bounds = array<i64: 1, 32>}, {transform_indices = @transform_9, window_bounds = array<i64: 64, 32>}]} {
    %c0 = arith.constant 0 : index
    %c0_0 = arith.constant 0 : index
    %0 = vector.load %arg1[%c0, %c0_0] : memref<64x3xf32, #tpu.memory_space<vmem>>, vector<64x3xf32>
    %c0_1 = arith.constant 0 : index
    %c0_2 = arith.constant 0 : index
    %1 = vector.load %arg2[%c0_1, %c0_2] : memref<3x64xf32, #tpu.memory_space<vmem>>, vector<3x64xf32>
    %cst = arith.constant dense<0.000000e+00> : vector<64x64xf32>
    %2 = tpu.matmul %0, %1, %cst {dimension_numbers = #tpu.dot_dimension_numbers<[1], [0], [0], [1], [0, 0, 1, 1], [], []>} : vector<64x3xf32>, vector<3x64xf32>, vector<64x64xf32> -> vector<64x64xf32>
    %c0_3 = arith.constant 0 : index
    %c0_4 = arith.constant 0 : index
    %3 = vector.load %arg3[%c0_3, %c0_4] : memref<1x64xf32, #tpu.memory_space<vmem>>, vector<1x64xf32>
    %4 = vector.broadcast %3 : vector<1x64xf32> to vector<64x64xf32>
    %5 = arith.addf %2, %4 : vector<64x64xf32>
    %c0_5 = arith.constant 0 : index
    %c0_6 = arith.constant 0 : index
    %6 = vector.load %arg4[%c0_5, %c0_6] : memref<1x64xf32, #tpu.memory_space<vmem>>, vector<1x64xf32>
    %c0_7 = arith.constant 0 : index
    %c0_8 = arith.constant 0 : index
    %7 = vector.load %arg5[%c0_7, %c0_8] : memref<1x64xf32, #tpu.memory_space<vmem>>, vector<1x64xf32>
    %cst_9 = arith.constant dense<0.000000e+00> : vector<64xf32>
    %8 = vector.multi_reduction <add>, %5, %cst_9 [1] : vector<64x64xf32> to vector<64xf32>
    %9 = vector.shape_cast %8 : vector<64xf32> to vector<64x1xf32>
    %cst_10 = arith.constant 6.400000e+01 : f32
    %10 = vector.broadcast %cst_10 : f32 to vector<64x1xf32>
    %11 = arith.divf %9, %10 : vector<64x1xf32>
    %12 = vector.broadcast %11 : vector<64x1xf32> to vector<64x64xf32>
    %13 = arith.subf %5, %12 : vector<64x64xf32>
    %14 = arith.mulf %13, %13 : vector<64x64xf32>
    %cst_11 = arith.constant dense<0.000000e+00> : vector<64xf32>
    %15 = vector.multi_reduction <add>, %14, %cst_11 [1] : vector<64x64xf32> to vector<64xf32>
    %16 = vector.shape_cast %15 : vector<64xf32> to vector<64x1xf32>
    %cst_12 = arith.constant 6.400000e+01 : f32
    %17 = vector.broadcast %cst_12 : f32 to vector<64x1xf32>
    %18 = arith.divf %16, %17 : vector<64x1xf32>
    %cst_13 = arith.constant 9.99999974E-6 : f32
    %19 = vector.broadcast %cst_13 : f32 to vector<64x1xf32>
    %20 = arith.addf %18, %19 : vector<64x1xf32>
    %21 = math.rsqrt %20 : vector<64x1xf32>
    %22 = vector.broadcast %21 : vector<64x1xf32> to vector<64x64xf32>
    %23 = arith.mulf %13, %22 : vector<64x64xf32>
    %24 = vector.broadcast %6 : vector<1x64xf32> to vector<64x64xf32>
    %25 = arith.mulf %23, %24 : vector<64x64xf32>
    %26 = vector.broadcast %7 : vector<1x64xf32> to vector<64x64xf32>
    %27 = arith.addf %25, %26 : vector<64x64xf32>
    %cst_14 = arith.constant 0.000000e+00 : f32
    %28 = vector.broadcast %cst_14 : f32 to vector<64x64xf32>
    %29 = arith.maximumf %27, %28 : vector<64x64xf32>
    %c0_15 = arith.constant 0 : index
    %c0_16 = arith.constant 0 : index
    %30 = vector.load %arg6[%c0_15, %c0_16] : memref<64x32xf32, #tpu.memory_space<vmem>>, vector<64x32xf32>
    %c0_17 = arith.constant 0 : index
    %c0_18 = arith.constant 0 : index
    %31 = vector.load %arg7[%c0_17, %c0_18] : memref<1x32xf32, #tpu.memory_space<vmem>>, vector<1x32xf32>
    %c0_19 = arith.constant 0 : index
    %c0_20 = arith.constant 0 : index
    %32 = vector.load %arg8[%c0_19, %c0_20] : memref<1x32xf32, #tpu.memory_space<vmem>>, vector<1x32xf32>
    %c0_21 = arith.constant 0 : index
    %c0_22 = arith.constant 0 : index
    %33 = vector.load %arg9[%c0_21, %c0_22] : memref<1x32xf32, #tpu.memory_space<vmem>>, vector<1x32xf32>
    %cst_23 = arith.constant dense<0.000000e+00> : vector<64x32xf32>
    %34 = tpu.matmul %29, %30, %cst_23 {dimension_numbers = #tpu.dot_dimension_numbers<[1], [0], [0], [1], [0, 0, 1, 1], [], []>} : vector<64x64xf32>, vector<64x32xf32>, vector<64x32xf32> -> vector<64x32xf32>
    %35 = vector.broadcast %31 : vector<1x32xf32> to vector<64x32xf32>
    %36 = arith.addf %34, %35 : vector<64x32xf32>
    %cst_24 = arith.constant dense<0.000000e+00> : vector<64xf32>
    %37 = vector.multi_reduction <add>, %36, %cst_24 [1] : vector<64x32xf32> to vector<64xf32>
    %38 = vector.shape_cast %37 : vector<64xf32> to vector<64x1xf32>
    %cst_25 = arith.constant 3.200000e+01 : f32
    %39 = vector.broadcast %cst_25 : f32 to vector<64x1xf32>
    %40 = arith.divf %38, %39 : vector<64x1xf32>
    %41 = vector.broadcast %40 : vector<64x1xf32> to vector<64x32xf32>
    %42 = arith.subf %36, %41 : vector<64x32xf32>
    %43 = arith.mulf %42, %42 : vector<64x32xf32>
    %cst_26 = arith.constant dense<0.000000e+00> : vector<64xf32>
    %44 = vector.multi_reduction <add>, %43, %cst_26 [1] : vector<64x32xf32> to vector<64xf32>
    %45 = vector.shape_cast %44 : vector<64xf32> to vector<64x1xf32>
    %cst_27 = arith.constant 3.200000e+01 : f32
    %46 = vector.broadcast %cst_27 : f32 to vector<64x1xf32>
    %47 = arith.divf %45, %46 : vector<64x1xf32>
    %cst_28 = arith.constant 9.99999974E-6 : f32
    %48 = vector.broadcast %cst_28 : f32 to vector<64x1xf32>
    %49 = arith.addf %47, %48 : vector<64x1xf32>
    %50 = math.rsqrt %49 : vector<64x1xf32>
    %51 = vector.broadcast %50 : vector<64x1xf32> to vector<64x32xf32>
    %52 = arith.mulf %42, %51 : vector<64x32xf32>
    %53 = vector.broadcast %32 : vector<1x32xf32> to vector<64x32xf32>
    %54 = arith.mulf %52, %53 : vector<64x32xf32>
    %55 = vector.broadcast %33 : vector<1x32xf32> to vector<64x32xf32>
    %56 = arith.addf %54, %55 : vector<64x32xf32>
    %cst_29 = arith.constant 0.000000e+00 : f32
    %57 = vector.broadcast %cst_29 : f32 to vector<64x32xf32>
    %58 = arith.maximumf %56, %57 : vector<64x32xf32>
    %59 = arith.truncf %58 : vector<64x32xf32> to vector<64x32xbf16>
    %c0_30 = arith.constant 0 : index
    %c0_31 = arith.constant 0 : index
    %60 = vector.load %arg10[%c0_30, %c0_31] : memref<64x32xbf16, #tpu.memory_space<vmem>>, vector<64x32xbf16>
    tpu.vector_store %arg10[%c0_30, %c0_31], %59 {strides = array<i32>} : memref<64x32xbf16, #tpu.memory_space<vmem>>, vector<64x32xbf16>,
    return
  }
  func.func @transform_0(%arg0: i32) -> (i32, i32) {
    %c0_i32 = arith.constant 0 : i32
    %c0_i32_0 = arith.constant 0 : i32
    return %arg0, %c0_i32 : i32, i32
  }
  func.func @transform_1(%arg0: i32) -> (i32, i32) {
    %c0_i32 = arith.constant 0 : i32
    %c0_i32_0 = arith.constant 0 : i32
    %c0_i32_1 = arith.constant 0 : i32
    return %c0_i32, %c0_i32_0 : i32, i32
  }
  func.func @transform_2(%arg0: i32) -> (i32, i32) {
    %c0_i32 = arith.constant 0 : i32
    %c0_i32_0 = arith.constant 0 : i32
    %c0_i32_1 = arith.constant 0 : i32
    return %c0_i32, %c0_i32_0 : i32, i32
  }
  func.func @transform_3(%arg0: i32) -> (i32, i32) {
    %c0_i32 = arith.constant 0 : i32
    %c0_i32_0 = arith.constant 0 : i32
    %c0_i32_1 = arith.constant 0 : i32
    return %c0_i32, %c0_i32_0 : i32, i32
  }
  func.func @transform_4(%arg0: i32) -> (i32, i32) {
    %c0_i32 = arith.constant 0 : i32
    %c0_i32_0 = arith.constant 0 : i32
    %c0_i32_1 = arith.constant 0 : i32
    return %c0_i32, %c0_i32_0 : i32, i32
  }
  func.func @transform_5(%arg0: i32) -> (i32, i32) {
    %c0_i32 = arith.constant 0 : i32
    %c0_i32_0 = arith.constant 0 : i32
    %c0_i32_1 = arith.constant 0 : i32
    return %c0_i32, %c0_i32_0 : i32, i32
  }
  func.func @transform_6(%arg0: i32) -> (i32, i32) {
    %c0_i32 = arith.constant 0 : i32
    %c0_i32_0 = arith.constant 0 : i32
    %c0_i32_1 = arith.constant 0 : i32
    return %c0_i32, %c0_i32_0 : i32, i32
  }
  func.func @transform_7(%arg0: i32) -> (i32, i32) {
    %c0_i32 = arith.constant 0 : i32
    %c0_i32_0 = arith.constant 0 : i32
    %c0_i32_1 = arith.constant 0 : i32
    return %c0_i32, %c0_i32_0 : i32, i32
  }
  func.func @transform_8(%arg0: i32) -> (i32, i32) {
    %c0_i32 = arith.constant 0 : i32
    %c0_i32_0 = arith.constant 0 : i32
    %c0_i32_1 = arith.constant 0 : i32
    return %c0_i32, %c0_i32_0 : i32, i32
  }
  func.func @transform_9(%arg0: i32) -> (i32, i32) {
    %c0_i32 = arith.constant 0 : i32
    %c0_i32_0 = arith.constant 0 : i32
    return %arg0, %c0_i32 : i32, i32
  }
}

</mosaic_0001>

<llo_original>
// kernel: tpu_custom_call.1
$region0: #{tpu_custom_call.1}
  #allocation0 [shape = 'u32[]', space=smem, size = 0x4, offset = 0x4, fixed_abs, tag = 'smem constant byte address 0x4 - core index']
  #allocation1 [shape = 'u32[144,128]{1,0:T(1,128)}', space=vmem, size = 0x12000, scoped, tag = 'internal scratch']
  %s0 = inlined_call_operand.vmem [shape: f32[64,3], index: 0, kind: input, shape index: {}]
  %s1 = inlined_call_operand.vmem [shape: f32[3,64], index: 1, kind: input, shape index: {}]
  %s2 = inlined_call_operand.vmem [shape: f32[1,64], index: 2, kind: input, shape index: {}]
  %s3 = inlined_call_operand.vmem [shape: f32[1,64], index: 3, kind: input, shape index: {}]
  %s4 = inlined_call_operand.vmem [shape: f32[1,64], index: 4, kind: input, shape index: {}]
  %s5 = inlined_call_operand.vmem [shape: f32[64,32], index: 5, kind: input, shape index: {}]
  %s6 = inlined_call_operand.vmem [shape: f32[1,32], index: 6, kind: input, shape index: {}]
  %s7 = inlined_call_operand.vmem [shape: f32[1,32], index: 7, kind: input, shape index: {}]
  %s8 = inlined_call_operand.vmem [shape: f32[1,32], index: 8, kind: input, shape index: {}]
  %s9 = inlined_call_operand.vmem [shape: bf16[64,32], index: 9, kind: output, shape index: {}]
  %s10 = sld [smem:[#allocation0]]
  $region46: #{tpu_custom_call.1} parent=0
    _
  %s12 = ssub.s32 1, %s10
  %s13 = scalar_select 0, %s12, %s10
  // Predicated region
  $region2: #{tpu_custom_call.1} parent=0 // pred_check
    _
  $region3: #{tpu_custom_call.1} parent=0 // pred_check_branch
    %15 = sbr.rel (0) target = $region5
  $region4: #{tpu_custom_call.1} parent=0 // pred_region
    _
  $region5: #{tpu_custom_call.1} parent=0 // pred_fallthru
    _
  // Predicated region
  $region6: #{tpu_custom_call.1} parent=0 // pred_check
    _
  $region7: #{tpu_custom_call.1} parent=0 // pred_check_branch
    %17 = sbr.rel (0) target = $region9
  $region8: #{tpu_custom_call.1} parent=0 // pred_region
    _
  $region9: #{tpu_custom_call.1} parent=0 // pred_fallthru
    _
  // Predicated region
  $region10: #{tpu_custom_call.1} parent=0 // pred_check
    _
  $region11: #{tpu_custom_call.1} parent=0 // pred_check_branch
    %19 = sbr.rel (0) target = $region13
  $region12: #{tpu_custom_call.1} parent=0 // pred_region
    _
  $region13: #{tpu_custom_call.1} parent=0 // pred_fallthru
    _
  // Predicated region
  $region14: #{tpu_custom_call.1} parent=0 // pred_check
    _
  $region15: #{tpu_custom_call.1} parent=0 // pred_check_branch
    %21 = sbr.rel (0) target = $region17
  $region16: #{tpu_custom_call.1} parent=0 // pred_region
    _
  $region17: #{tpu_custom_call.1} parent=0 // pred_fallthru
    _
  // Predicated region
  $region18: #{tpu_custom_call.1} parent=0 // pred_check
    _
  $region19: #{tpu_custom_call.1} parent=0 // pred_check_branch
    %23 = sbr.rel (0) target = $region21
  $region20: #{tpu_custom_call.1} parent=0 // pred_region
    _
  $region21: #{tpu_custom_call.1} parent=0 // pred_fallthru
    _
  // Predicated region
  $region22: #{tpu_custom_call.1} parent=0 // pred_check
    _
  $region23: #{tpu_custom_call.1} parent=0 // pred_check_branch
    %25 = sbr.rel (0) target = $region25
  $region24: #{tpu_custom_call.1} parent=0 // pred_region
    _
  $region25: #{tpu_custom_call.1} parent=0 // pred_fallthru
    _
  // Predicated region
  $region26: #{tpu_custom_call.1} parent=0 // pred_check
    _
  $region27: #{tpu_custom_call.1} parent=0 // pred_check_branch
    %27 = sbr.rel (0) target = $region29
  $region28: #{tpu_custom_call.1} parent=0 // pred_region
    _
  $region29: #{tpu_custom_call.1} parent=0 // pred_fallthru
    _
  // Predicated region
  $region30: #{tpu_custom_call.1} parent=0 // pred_check
    _
  $region31: #{tpu_custom_call.1} parent=0 // pred_check_branch
    %29 = sbr.rel (0) target = $region33
  $region32: #{tpu_custom_call.1} parent=0 // pred_region
    _
  $region33: #{tpu_custom_call.1} parent=0 // pred_fallthru
    _
  // Predicated region
  $region34: #{tpu_custom_call.1} parent=0 // pred_check
    _
  $region35: #{tpu_custom_call.1} parent=0 // pred_check_branch
    %31 = sbr.rel (0) target = $region37
  $region36: #{tpu_custom_call.1} parent=0 // pred_region
    _
  $region37: #{tpu_custom_call.1} parent=0 // pred_fallthru
    _
  %v32 = vld [vmem:[%s0] sm:$0xff]
  %v33 = vld [vmem:[%s0 + $0x8] sm:$0xff]
  %v34 = vld [vmem:[%s0 + $0x10] sm:$0xff]
  %v35 = vld [vmem:[%s0 + $0x18] sm:$0xff]
  %v36 = vld [vmem:[%s0 + $0x20] sm:$0xff]
  %v37 = vld [vmem:[%s0 + $0x28] sm:$0xff]
  %v38 = vld [vmem:[%s0 + $0x30] sm:$0xff]
  %v39 = vld [vmem:[%s0 + $0x38] sm:$0xff]
  %v40 = vld [vmem:[%s1] sm:$0x7]
  %v41 = vld [vmem:[%s2] sm:$0x1]
  %v43 = vlaneseq
  %v44 = vshrl.u32 %v43, 7
  %v45 = vsub.s32 0, %v44
  %v46 = vrot.slane %v41, %v45
  %vm48 = vcmask 23552
  %v50 = vsel %vm48, %v32, 0
  %v53 = vsel %vm48, %v33, 0
  %v56 = vsel %vm48, %v34, 0
  %v59 = vsel %vm48, %v35, 0
  %v62 = vsel %vm48, %v36, 0
  %v65 = vsel %vm48, %v37, 0
  %v68 = vsel %vm48, %v38, 0
  %v71 = vsel %vm48, %v39, 0
  %vm73 = vcmask 1042432
  %v75 = vsel %vm73, %v40, 0
  %77 = vmatprep.subr.mxu0 0.0
  %78 = vmatpush1.msra.mxu0 %v75
  %79 = vmatprep.subr.mxu0 0.0
  %80 = vmatpush1.msra.mxu0 0.0
  %81 = vmatprep.subr.mxu0 0.0
  %82 = vmatpush1.msra.mxu0 0.0
  %83 = vmatprep.subr.mxu0 0.0
  %84 = vmatpush1.msra.mxu0 0.0
  %85 = vmatprep.subr.mxu0 0.0
  %86 = vmatpush1.msra.mxu0 0.0
  %87 = vmatprep.subr.mxu0 0.0
  %88 = vmatpush1.msra.mxu0 0.0
  %89 = vmatprep.subr.mxu0 0.0
  %90 = vmatpush1.msra.mxu0 0.0
  %91 = vmatprep.subr.mxu0 0.0
  %92 = vmatpush1.msra.mxu0 0.0
  %93 = vmatprep.subr.mxu0 0.0
  %94 = vmatpush1.msra.mxu0 0.0
  %95 = vmatprep.subr.mxu0 0.0
  %96 = vmatpush1.msra.mxu0 0.0
  %97 = vmatprep.subr.mxu0 0.0
  %98 = vmatpush1.msra.mxu0 0.0
  %99 = vmatprep.subr.mxu0 0.0
  %100 = vmatpush1.msra.mxu0 0.0
  %101 = vmatprep.subr.mxu0 0.0
  %102 = vmatpush1.msra.mxu0 0.0
  %103 = vmatprep.subr.mxu0 0.0
  %104 = vmatpush1.msra.mxu0 0.0
  %105 = vmatprep.subr.mxu0 0.0
  %106 = vmatpush1.msra.mxu0 0.0
  %107 = vmatprep.subr.mxu0 0.0
  %108 = vmatpush1.msra.mxu0 0.0
  %109 = vmatprep.subr.mxu0 0.0
  %110 = vmatpush1.msra.mxu0 0.0
  %111 = vmatprep.subr.mxu0 0.0
  %112 = vmatpush1.msra.mxu0 0.0
  %113 = vmatprep.subr.mxu0 0.0
  %114 = vmatpush1.msra.mxu0 0.0
  %115 = vmatprep.subr.mxu0 0.0
  %116 = vmatpush1.msra.mxu0 0.0
  %117 = vmatprep.subr.mxu0 0.0
  %118 = vmatpush1.msra.mxu0 0.0
  %119 = vmatprep.subr.mxu0 0.0
  %120 = vmatpush1.msra.mxu0 0.0
  %121 = vmatprep.subr.mxu0 0.0
  %122 = vmatpush1.msra.mxu0 0.0
  %123 = vmatprep.subr.mxu0 0.0
  %124 = vmatpush1.msra.mxu0 0.0
  %125 = vmatprep.subr.mxu0 0.0
  %126 = vmatpush1.msra.mxu0 0.0
  %127 = vmatprep.subr.mxu0 0.0
  %128 = vmatpush1.msra.mxu0 0.0
  %129 = vmatprep.subr.mxu0 0.0
  %130 = vmatpush1.msra.mxu0 0.0
  %131 = vmatprep.subr.mxu0 0.0
  %132 = vmatpush1.msra.mxu0 0.0
  %133 = vmatprep.subr.mxu0 0.0
  %134 = vmatpush1.msra.mxu0 0.0
  %135 = vmatprep.subr.mxu0 0.0
  %136 = vmatpush1.msra.mxu0 0.0
  %137 = vmatprep.subr.mxu0 0.0
  %138 = vmatpush1.msra.mxu0 0.0
  %139 = vmatprep.subr.mxu0 0.0
  %140 = vmatpush1.msra.mxu0 0.0
  %141 = vmatprep.mubr.f32.mxu0 0.0
  %142 = vmatmul.mubr.f32.gmra.mrb[0].mxu0 %v50
  %v143 = vpop.f32.mrb[0].mxu0
  %v144 = vadd.f32 %v46, %v143
  %v145 = vpop.f32.mrb[0].mxu0
  %146 = vmatprep.mubr.f32.mxu0 0.0
  %147 = vmatmul.mubr.f32.gmra.mrb[0].mxu0 %v53
  %v148 = vpop.f32.mrb[0].mxu0
  %v149 = vadd.f32 %v46, %v148
  %v150 = vpop.f32.mrb[0].mxu0
  %151 = vmatprep.mubr.f32.mxu0 0.0
  %152 = vmatmul.mubr.f32.gmra.mrb[0].mxu0 %v56
  %v153 = vpop.f32.mrb[0].mxu0
  %v154 = vadd.f32 %v46, %v153
  %v155 = vpop.f32.mrb[0].mxu0
  %156 = vmatprep.mubr.f32.mxu0 0.0
  %157 = vmatmul.mubr.f32.gmra.mrb[0].mxu0 %v59
  %v158 = vpop.f32.mrb[0].mxu0
  %v159 = vadd.f32 %v46, %v158
  %v160 = vpop.f32.mrb[0].mxu0
  %161 = vmatprep.mubr.f32.mxu0 0.0
  %162 = vmatmul.mubr.f32.gmra.mrb[0].mxu0 %v62
  %v163 = vpop.f32.mrb[0].mxu0
  %v164 = vadd.f32 %v46, %v163
  %v165 = vpop.f32.mrb[0].mxu0
  %166 = vmatprep.mubr.f32.mxu0 0.0
  %167 = vmatmul.mubr.f32.gmra.mrb[0].mxu0 %v65
  %v168 = vpop.f32.mrb[0].mxu0
  %v169 = vadd.f32 %v46, %v168
  %v170 = vpop.f32.mrb[0].mxu0
  %171 = vmatprep.mubr.f32.mxu0 0.0
  %172 = vmatmul.mubr.f32.gmra.mrb[0].mxu0 %v68
  %v173 = vpop.f32.mrb[0].mxu0
  %v174 = vadd.f32 %v46, %v173
  %v175 = vpop.f32.mrb[0].mxu0
  %176 = vmatprep.mubr.f32.mxu0 0.0
  %177 = vmatmul.mubr.f32.gmra.mrb[0].mxu0 %v71
  %v178 = vpop.f32.mrb[0].mxu0
  %v179 = vadd.f32 %v46, %v178
  %v180 = vpop.f32.mrb[0].mxu0
  %181 = vdwg.mxu0
  %v182 = vld [vmem:[%s3] sm:$0x1]
  %v183 = vld [vmem:[%s4] sm:$0x1]
  %vm184 = vcmask 523264
  %v185 = vsel %vm184, %v144, 0.0
  %186 = vadd.xlane.f32.xlu0 %v185
  %v187 = vpop.xlane.xlu0 %186
  %v188 = vsel %vm184, %v149, 0.0
  %189 = vadd.xlane.f32.xlu0 %v188
  %v190 = vpop.xlane.xlu0 %189
  %v191 = vsel %vm184, %v154, 0.0
  %192 = vadd.xlane.f32.xlu0 %v191
  %v193 = vpop.xlane.xlu0 %192
  %v194 = vsel %vm184, %v159, 0.0
  %195 = vadd.xlane.f32.xlu0 %v194
  %v196 = vpop.xlane.xlu0 %195
  %v197 = vsel %vm184, %v164, 0.0
  %198 = vadd.xlane.f32.xlu0 %v197
  %v199 = vpop.xlane.xlu0 %198
  %v200 = vsel %vm184, %v169, 0.0
  %201 = vadd.xlane.f32.xlu0 %v200
  %v202 = vpop.xlane.xlu0 %201
  %v203 = vsel %vm184, %v174, 0.0
  %204 = vadd.xlane.f32.xlu0 %v203
  %v205 = vpop.xlane.xlu0 %204
  %v206 = vsel %vm184, %v179, 0.0
  %207 = vadd.xlane.f32.xlu0 %v206
  %v208 = vpop.xlane.xlu0 %207
  %v209 = vrcp.pop 64.0
  %v210 = vmul.f32 %v187, %v209
  %v211 = vmul.f32 %v190, %v209
  %v212 = vmul.f32 %v193, %v209
  %v213 = vmul.f32 %v196, %v209
  %v214 = vmul.f32 %v199, %v209
  %v215 = vmul.f32 %v202, %v209
  %v216 = vmul.f32 %v205, %v209
  %v217 = vmul.f32 %v208, %v209
  %v218 = vsub.f32 %v144, %v210
  %v219 = vsub.f32 %v149, %v211
  %v220 = vsub.f32 %v154, %v212
  %v221 = vsub.f32 %v159, %v213
  %v222 = vsub.f32 %v164, %v214
  %v223 = vsub.f32 %v169, %v215
  %v224 = vsub.f32 %v174, %v216
  %v225 = vsub.f32 %v179, %v217
  %v226 = vmul.f32 %v218, %v218
  %v227 = vmul.f32 %v219, %v219
  %v228 = vmul.f32 %v220, %v220
  %v229 = vmul.f32 %v221, %v221
  %v230 = vmul.f32 %v222, %v222
  %v231 = vmul.f32 %v223, %v223
  %v232 = vmul.f32 %v224, %v224
  %v233 = vmul.f32 %v225, %v225
  %v234 = vsel %vm184, %v226, 0.0
  %235 = vadd.xlane.f32.xlu0 %v234
  %v236 = vpop.xlane.xlu0 %235
  %v237 = vsel %vm184, %v227, 0.0
  %238 = vadd.xlane.f32.xlu0 %v237
  %v239 = vpop.xlane.xlu0 %238
  %v240 = vsel %vm184, %v228, 0.0
  %241 = vadd.xlane.f32.xlu0 %v240
  %v242 = vpop.xlane.xlu0 %241
  %v243 = vsel %vm184, %v229, 0.0
  %244 = vadd.xlane.f32.xlu0 %v243
  %v245 = vpop.xlane.xlu0 %244
  %v246 = vsel %vm184, %v230, 0.0
  %247 = vadd.xlane.f32.xlu0 %v246
  %v248 = vpop.xlane.xlu0 %247
  %v249 = vsel %vm184, %v231, 0.0
  %250 = vadd.xlane.f32.xlu0 %v249
  %v251 = vpop.xlane.xlu0 %250
  %v252 = vsel %vm184, %v232, 0.0
  %253 = vadd.xlane.f32.xlu0 %v252
  %v254 = vpop.xlane.xlu0 %253
  %v255 = vsel %vm184, %v233, 0.0
  %256 = vadd.xlane.f32.xlu0 %v255
  %v257 = vpop.xlane.xlu0 %256
  %v258 = vmul.f32 %v236, %v209
  %v259 = vmul.f32 %v239, %v209
  %v260 = vmul.f32 %v242, %v209
  %v261 = vmul.f32 %v245, %v209
  %v262 = vmul.f32 %v248, %v209
  %v263 = vmul.f32 %v251, %v209
  %v264 = vmul.f32 %v254, %v209
  %v265 = vmul.f32 %v257, %v209
  %v266 = vadd.f32 %v258, 1e-05
  %v267 = vadd.f32 %v259, 1e-05
  %v268 = vadd.f32 %v260, 1e-05
  %v269 = vadd.f32 %v261, 1e-05
  %v270 = vadd.f32 %v262, 1e-05
  %v271 = vadd.f32 %v263, 1e-05
  %v272 = vadd.f32 %v264, 1e-05
  %v273 = vadd.f32 %v265, 1e-05
  %v274 = vrsqrt.pop %v266
  %v275 = vrsqrt.pop %v267
  %v276 = vrsqrt.pop %v268
  %v277 = vrsqrt.pop %v269
  %v278 = vrsqrt.pop %v270
  %v279 = vrsqrt.pop %v271
  %v280 = vrsqrt.pop %v272
  %v281 = vrsqrt.pop %v273
  %v282 = vmul.f32 %v218, %v274
  %v283 = vmul.f32 %v219, %v275
  %v284 = vmul.f32 %v220, %v276
  %v285 = vmul.f32 %v221, %v277
  %v286 = vmul.f32 %v222, %v278
  %v287 = vmul.f32 %v223, %v279
  %v288 = vmul.f32 %v224, %v280
  %v289 = vmul.f32 %v225, %v281
  %v291 = vlaneseq
  %v292 = vshrl.u32 %v291, 7
  %v293 = vsub.s32 0, %v292
  %v294 = vrot.slane %v182, %v293
  %v296 = vmul.f32 %v282, %v294
  %v297 = vmul.f32 %v283, %v294
  %v298 = vmul.f32 %v284, %v294
  %v299 = vmul.f32 %v285, %v294
  %v300 = vmul.f32 %v286, %v294
  %v301 = vmul.f32 %v287, %v294
  %v302 = vmul.f32 %v288, %v294
  %v303 = vmul.f32 %v289, %v294
  %v305 = vlaneseq
  %v306 = vshrl.u32 %v305, 7
  %v307 = vsub.s32 0, %v306
  %v308 = vrot.slane %v183, %v307
  %v310 = vadd.f32 %v296, %v308
  %v311 = vadd.f32 %v297, %v308
  %v312 = vadd.f32 %v298, %v308
  %v313 = vadd.f32 %v299, %v308
  %v314 = vadd.f32 %v300, %v308
  %v315 = vadd.f32 %v301, %v308
  %v316 = vadd.f32 %v302, %v308
  %v317 = vadd.f32 %v303, %v308
  %v318 = vmax.f32 %v310, 0.0
  %v319 = vmax.f32 %v311, 0.0
  %v320 = vmax.f32 %v312, 0.0
  %v321 = vmax.f32 %v313, 0.0
  %v322 = vmax.f32 %v314, 0.0
  %v323 = vmax.f32 %v315, 0.0
  %v324 = vmax.f32 %v316, 0.0
  %v325 = vmax.f32 %v317, 0.0
  %v326 = vld [vmem:[%s5] sm:$0xff]
  %v327 = vld [vmem:[%s5 + $0x8] sm:$0xff]
  %v328 = vld [vmem:[%s5 + $0x10] sm:$0xff]
  %v329 = vld [vmem:[%s5 + $0x18] sm:$0xff]
  %v330 = vld [vmem:[%s5 + $0x20] sm:$0xff]
  %v331 = vld [vmem:[%s5 + $0x28] sm:$0xff]
  %v332 = vld [vmem:[%s5 + $0x30] sm:$0xff]
  %v333 = vld [vmem:[%s5 + $0x38] sm:$0xff]
  %v334 = vld [vmem:[%s6] sm:$0x1]
  %v335 = vld [vmem:[%s7] sm:$0x1]
  %v336 = vld [vmem:[%s8] sm:$0x1]
  %v338 = vlaneseq
  %v339 = vshrl.u32 %v338, 7
  %v340 = vsub.s32 0, %v339
  %v341 = vrot.slane %v334, %v340
  %v344 = vsel %vm184, %v318, 0
  %v347 = vsel %vm184, %v319, 0
  %v350 = vsel %vm184, %v320, 0
  %v353 = vsel %vm184, %v321, 0
  %v356 = vsel %vm184, %v322, 0
  %v359 = vsel %vm184, %v323, 0
  %v362 = vsel %vm184, %v324, 0
  %v365 = vsel %vm184, %v325, 0
  %367 = vmatprep.subr.mxu0 0.0
  %368 = vmatpush1.msra.mxu0 %v326
  %369 = vmatprep.subr.mxu0 0.0
  %370 = vmatpush1.msra.mxu0 %v327
  %371 = vmatprep.subr.mxu0 0.0
  %372 = vmatpush1.msra.mxu0 %v328
  %373 = vmatprep.subr.mxu0 0.0
  %374 = vmatpush1.msra.mxu0 %v329
  %375 = vmatprep.subr.mxu0 0.0
  %376 = vmatpush1.msra.mxu0 %v330
  %377 = vmatprep.subr.mxu0 0.0
  %378 = vmatpush1.msra.mxu0 %v331
  %379 = vmatprep.subr.mxu0 0.0
  %380 = vmatpush1.msra.mxu0 %v332
  %381 = vmatprep.subr.mxu0 0.0
  %382 = vmatpush1.msra.mxu0 %v333
  %383 = vmatprep.subr.mxu0 0.0
  %384 = vmatpush1.msra.mxu0 0.0
  %385 = vmatprep.subr.mxu0 0.0
  %386 = vmatpush1.msra.mxu0 0.0
  %387 = vmatprep.subr.mxu0 0.0
  %388 = vmatpush1.msra.mxu0 0.0
  %389 = vmatprep.subr.mxu0 0.0
  %390 = vmatpush1.msra.mxu0 0.0
  %391 = vmatprep.subr.mxu0 0.0
  %392 = vmatpush1.msra.mxu0 0.0
  %393 = vmatprep.subr.mxu0 0.0
  %394 = vmatpush1.msra.mxu0 0.0
  %395 = vmatprep.subr.mxu0 0.0
  %396 = vmatpush1.msra.mxu0 0.0
  %397 = vmatprep.subr.mxu0 0.0
  %398 = vmatpush1.msra.mxu0 0.0
  %399 = vmatprep.subr.mxu0 0.0
  %400 = vmatpush1.msra.mxu0 0.0
  %401 = vmatprep.subr.mxu0 0.0
  %402 = vmatpush1.msra.mxu0 0.0
  %403 = vmatprep.subr.mxu0 0.0
  %404 = vmatpush1.msra.mxu0 0.0
  %405 = vmatprep.subr.mxu0 0.0
  %406 = vmatpush1.msra.mxu0 0.0
  %407 = vmatprep.subr.mxu0 0.0
  %408 = vmatpush1.msra.mxu0 0.0
  %409 = vmatprep.subr.mxu0 0.0
  %410 = vmatpush1.msra.mxu0 0.0
  %411 = vmatprep.subr.mxu0 0.0
  %412 = vmatpush1.msra.mxu0 0.0
  %413 = vmatprep.subr.mxu0 0.0
  %414 = vmatpush1.msra.mxu0 0.0
  %415 = vmatprep.subr.mxu0 0.0
  %416 = vmatpush1.msra.mxu0 0.0
  %417 = vmatprep.subr.mxu0 0.0
  %418 = vmatpush1.msra.mxu0 0.0
  %419 = vmatprep.subr.mxu0 0.0
  %420 = vmatpush1.msra.mxu0 0.0
  %421 = vmatprep.subr.mxu0 0.0
  %422 = vmatpush1.msra.mxu0 0.0
  %423 = vmatprep.subr.mxu0 0.0
  %424 = vmatpush1.msra.mxu0 0.0
  %425 = vmatprep.subr.mxu0 0.0
  %426 = vmatpush1.msra.mxu0 0.0
  %427 = vmatprep.subr.mxu0 0.0
  %428 = vmatpush1.msra.mxu0 0.0
  %429 = vmatprep.subr.mxu0 0.0
  %430 = vmatpush1.msra.mxu0 0.0
  %431 = vmatprep.mubr.f32.mxu0 0.0
  %432 = vmatmul.mubr.f32.gmra.mrb[0].mxu0 %v344
  %v433 = vpop.f32.mrb[0].mxu0
  %v434 = vadd.f32 %v341, %v433
  %v435 = vpop.f32.mrb[0].mxu0
  %436 = vmatprep.mubr.f32.mxu0 0.0
  %437 = vmatmul.mubr.f32.gmra.mrb[0].mxu0 %v347
  %v438 = vpop.f32.mrb[0].mxu0
  %v439 = vadd.f32 %v341, %v438
  %v440 = vpop.f32.mrb[0].mxu0
  %441 = vmatprep.mubr.f32.mxu0 0.0
  %442 = vmatmul.mubr.f32.gmra.mrb[0].mxu0 %v350
  %v443 = vpop.f32.mrb[0].mxu0
  %v444 = vadd.f32 %v341, %v443
  %v445 = vpop.f32.mrb[0].mxu0
  %446 = vmatprep.mubr.f32.mxu0 0.0
  %447 = vmatmul.mubr.f32.gmra.mrb[0].mxu0 %v353
  %v448 = vpop.f32.mrb[0].mxu0
  %v449 = vadd.f32 %v341, %v448
  %v450 = vpop.f32.mrb[0].mxu0
  %451 = vmatprep.mubr.f32.mxu0 0.0
  %452 = vmatmul.mubr.f32.gmra.mrb[0].mxu0 %v356
  %v453 = vpop.f32.mrb[0].mxu0
  %v454 = vadd.f32 %v341, %v453
  %v455 = vpop.f32.mrb[0].mxu0
  %456 = vmatprep.mubr.f32.mxu0 0.0
  %457 = vmatmul.mubr.f32.gmra.mrb[0].mxu0 %v359
  %v458 = vpop.f32.mrb[0].mxu0
  %v459 = vadd.f32 %v341, %v458
  %v460 = vpop.f32.mrb[0].mxu0
  %461 = vmatprep.mubr.f32.mxu0 0.0
  %462 = vmatmul.mubr.f32.gmra.mrb[0].mxu0 %v362
  %v463 = vpop.f32.mrb[0].mxu0
  %v464 = vadd.f32 %v341, %v463
  %v465 = vpop.f32.mrb[0].mxu0
  %466 = vmatprep.mubr.f32.mxu0 0.0
  %467 = vmatmul.mubr.f32.gmra.mrb[0].mxu0 %v365
  %v468 = vpop.f32.mrb[0].mxu0
  %v469 = vadd.f32 %v341, %v468
  %v470 = vpop.f32.mrb[0].mxu0
  %471 = vdwg.mxu0
  %vm472 = vcmask 261120
  %v473 = vsel %vm472, %v434, 0.0
  %474 = vadd.xlane.f32.xlu0 %v473
  %v475 = vpop.xlane.xlu0 %474
  %v476 = vsel %vm472, %v439, 0.0
  %477 = vadd.xlane.f32.xlu0 %v476
  %v478 = vpop.xlane.xlu0 %477
  %v479 = vsel %vm472, %v444, 0.0
  %480 = vadd.xlane.f32.xlu0 %v479
  %v481 = vpop.xlane.xlu0 %480
  %v482 = vsel %vm472, %v449, 0.0
  %483 = vadd.xlane.f32.xlu0 %v482
  %v484 = vpop.xlane.xlu0 %483
  %v485 = vsel %vm472, %v454, 0.0
  %486 = vadd.xlane.f32.xlu0 %v485
  %v487 = vpop.xlane.xlu0 %486
  %v488 = vsel %vm472, %v459, 0.0
  %489 = vadd.xlane.f32.xlu0 %v488
  %v490 = vpop.xlane.xlu0 %489
  %v491 = vsel %vm472, %v464, 0.0
  %492 = vadd.xlane.f32.xlu0 %v491
  %v493 = vpop.xlane.xlu0 %492
  %v494 = vsel %vm472, %v469, 0.0
  %495 = vadd.xlane.f32.xlu0 %v494
  %v496 = vpop.xlane.xlu0 %495
  %v497 = vrcp.pop 32.0
  %v498 = vmul.f32 %v475, %v497
  %v499 = vmul.f32 %v478, %v497
  %v500 = vmul.f32 %v481, %v497
  %v501 = vmul.f32 %v484, %v497
  %v502 = vmul.f32 %v487, %v497
  %v503 = vmul.f32 %v490, %v497
  %v504 = vmul.f32 %v493, %v497
  %v505 = vmul.f32 %v496, %v497
  %v506 = vsub.f32 %v434, %v498
  %v507 = vsub.f32 %v439, %v499
  %v508 = vsub.f32 %v444, %v500
  %v509 = vsub.f32 %v449, %v501
  %v510 = vsub.f32 %v454, %v502
  %v511 = vsub.f32 %v459, %v503
  %v512 = vsub.f32 %v464, %v504
  %v513 = vsub.f32 %v469, %v505
  %v514 = vmul.f32 %v506, %v506
  %v515 = vmul.f32 %v507, %v507
  %v516 = vmul.f32 %v508, %v508
  %v517 = vmul.f32 %v509, %v509
  %v518 = vmul.f32 %v510, %v510
  %v519 = vmul.f32 %v511, %v511
  %v520 = vmul.f32 %v512, %v512
  %v521 = vmul.f32 %v513, %v513
  %v522 = vsel %vm472, %v514, 0.0
  %523 = vadd.xlane.f32.xlu0 %v522
  %v524 = vpop.xlane.xlu0 %523
  %v525 = vsel %vm472, %v515, 0.0
  %526 = vadd.xlane.f32.xlu0 %v525
  %v527 = vpop.xlane.xlu0 %526
  %v528 = vsel %vm472, %v516, 0.0
  %529 = vadd.xlane.f32.xlu0 %v528
  %v530 = vpop.xlane.xlu0 %529
  %v531 = vsel %vm472, %v517, 0.0
  %532 = vadd.xlane.f32.xlu0 %v531
  %v533 = vpop.xlane.xlu0 %532
  %v534 = vsel %vm472, %v518, 0.0
  %535 = vadd.xlane.f32.xlu0 %v534
  %v536 = vpop.xlane.xlu0 %535
  %v537 = vsel %vm472, %v519, 0.0
  %538 = vadd.xlane.f32.xlu0 %v537
  %v539 = vpop.xlane.xlu0 %538
  %v540 = vsel %vm472, %v520, 0.0
  %541 = vadd.xlane.f32.xlu0 %v540
  %v542 = vpop.xlane.xlu0 %541
  %v543 = vsel %vm472, %v521, 0.0
  %544 = vadd.xlane.f32.xlu0 %v543
  %v545 = vpop.xlane.xlu0 %544
  %v546 = vmul.f32 %v524, %v497
  %v547 = vmul.f32 %v527, %v497
  %v548 = vmul.f32 %v530, %v497
  %v549 = vmul.f32 %v533, %v497
  %v550 = vmul.f32 %v536, %v497
  %v551 = vmul.f32 %v539, %v497
  %v552 = vmul.f32 %v542, %v497
  %v553 = vmul.f32 %v545, %v497
  %v554 = vadd.f32 %v546, 1e-05
  %v555 = vadd.f32 %v547, 1e-05
  %v556 = vadd.f32 %v548, 1e-05
  %v557 = vadd.f32 %v549, 1e-05
  %v558 = vadd.f32 %v550, 1e-05
  %v559 = vadd.f32 %v551, 1e-05
  %v560 = vadd.f32 %v552, 1e-05
  %v561 = vadd.f32 %v553, 1e-05
  %v562 = vrsqrt.pop %v554
  %v563 = vrsqrt.pop %v555
  %v564 = vrsqrt.pop %v556
  %v565 = vrsqrt.pop %v557
  %v566 = vrsqrt.pop %v558
  %v567 = vrsqrt.pop %v559
  %v568 = vrsqrt.pop %v560
  %v569 = vrsqrt.pop %v561
  %v570 = vmul.f32 %v506, %v562
  %v571 = vmul.f32 %v507, %v563
  %v572 = vmul.f32 %v508, %v564
  %v573 = vmul.f32 %v509, %v565
  %v574 = vmul.f32 %v510, %v566
  %v575 = vmul.f32 %v511, %v567
  %v576 = vmul.f32 %v512, %v568
  %v577 = vmul.f32 %v513, %v569
  %v579 = vlaneseq
  %v580 = vshrl.u32 %v579, 7
  %v581 = vsub.s32 0, %v580
  %v582 = vrot.slane %v335, %v581
  %v584 = vmul.f32 %v570, %v582
  %v585 = vmul.f32 %v571, %v582
  %v586 = vmul.f32 %v572, %v582
  %v587 = vmul.f32 %v573, %v582
  %v588 = vmul.f32 %v574, %v582
  %v589 = vmul.f32 %v575, %v582
  %v590 = vmul.f32 %v576, %v582
  %v591 = vmul.f32 %v577, %v582
  %v593 = vlaneseq
  %v594 = vshrl.u32 %v593, 7
  %v595 = vsub.s32 0, %v594
  %v596 = vrot.slane %v336, %v595
  %v598 = vadd.f32 %v584, %v596
  %v599 = vadd.f32 %v585, %v596
  %v600 = vadd.f32 %v586, %v596
  %v601 = vadd.f32 %v587, %v596
  %v602 = vadd.f32 %v588, %v596
  %v603 = vadd.f32 %v589, %v596
  %v604 = vadd.f32 %v590, %v596
  %v605 = vadd.f32 %v591, %v596
  %v606 = vmax.f32 %v598, 0.0
  %v607 = vmax.f32 %v599, 0.0
  %v608 = vmax.f32 %v600, 0.0
  %v609 = vmax.f32 %v601, 0.0
  %v610 = vmax.f32 %v602, 0.0
  %v611 = vmax.f32 %v603, 0.0
  %v612 = vmax.f32 %v604, 0.0
  %v613 = vmax.f32 %v605, 0.0
  %v614 = vpack.c.bf16 %v607, %v606
  %v615 = vpack.c.bf16 %v609, %v608
  %v616 = vpack.c.bf16 %v611, %v610
  %v617 = vpack.c.bf16 %v613, %v612
  %v622 = vunpack.c.l.b16 %v614
  %v623 = vunpack.c.h.b16 %v614
  %v624 = vunpack.c.l.b16 %v615
  %v625 = vunpack.c.h.b16 %v615
  %v626 = vunpack.c.l.b16 %v616
  %v627 = vunpack.c.h.b16 %v616
  %v628 = vunpack.c.l.b16 %v617
  %v629 = vunpack.c.h.b16 %v617
  %v630 = vpack.c.b16 %v622, %v622
  %v631 = vpack.c.b16 %v623, %v623
  %v632 = vpack.c.b16 %v624, %v624
  %v633 = vpack.c.b16 %v625, %v625
  %v634 = vpack.c.b16 %v626, %v626
  %v635 = vpack.c.b16 %v627, %v627
  %v636 = vpack.c.b16 %v628, %v628
  %v637 = vpack.c.b16 %v629, %v629
  %vm646 = vcmask 257024
  %647 = vst.msk [vmem:[%s9] sm:$0xf] %vm646, %v630
  %648 = vst.msk [vmem:[%s9 + $0x4] sm:$0xf] %vm646, %v631
  %649 = vst.msk [vmem:[%s9 + $0x8] sm:$0xf] %vm646, %v632
  %650 = vst.msk [vmem:[%s9 + $0xc] sm:$0xf] %vm646, %v633
  %651 = vst.msk [vmem:[%s9 + $0x10] sm:$0xf] %vm646, %v634
  %652 = vst.msk [vmem:[%s9 + $0x14] sm:$0xf] %vm646, %v635
  %653 = vst.msk [vmem:[%s9 + $0x18] sm:$0xf] %vm646, %v636
  %654 = vst.msk [vmem:[%s9 + $0x1c] sm:$0xf] %vm646, %v637
  // Predicated region
  $region38: #{tpu_custom_call.1} parent=0 // pred_check
    _
  $region39: #{tpu_custom_call.1} parent=0 // pred_check_branch
    %656 = sbr.rel (0) target = $region41
  $region40: #{tpu_custom_call.1} parent=0 // pred_region
    _
  $region41: #{tpu_custom_call.1} parent=0 // pred_fallthru
    _
  // Predicated region
  $region42: #{tpu_custom_call.1} parent=0 // pred_check
    _
  $region43: #{tpu_custom_call.1} parent=0 // pred_check_branch
    %658 = sbr.rel (0) target = $region45
  $region44: #{tpu_custom_call.1} parent=0 // pred_region
    _
  $region45: #{tpu_custom_call.1} parent=0 // pred_fallthru
    _

</llo_original>
